<compile_context>
chip_gen: v5e
topology: v5e:2x2
jax: 0.10.0
libtpu: 0.0.40
codegen_flags: <defaults>
</compile_context>

<pallas_src>
import jax
import jax.numpy as jnp
from jax.experimental import pallas as pl
from jax.experimental.pallas import tpu as pltpu

_LANE = 128
_SUBLANE = 8
# Below this channel count the (256-wide v6e/v7x, 128-wide v5e) MXU contraction is
# nearly empty and push/pop latency just sits on the mem-bound pipeline's critical
# path, so the 1x1 conv is routed through the VPU instead.
_MXU_MIN_C = 16


def _round_up(x, m):
    return (x + m - 1) // m * m


def _vmem_capacity_bytes():
    try:
        return int(pltpu.get_tpu_info().vmem_capacity_bytes)
    except Exception:
        return 64 * 1024 * 1024  # v7x per-TC size: safe lower bound on all generations


def _choose_tiling(B, C, HW, elem_bytes):
    """Returns (bb, tile_hw, n_spatial, hw_pad, vmem_limit_bytes)."""
    cap = _vmem_capacity_bytes()
    budget = int(cap * 0.70)   # working-set target used for tile sizing
    limit = int(cap * 0.80)    # scoped-VMEM limit handed to Mosaic (headroom for scratch)
    c8 = _round_up(C, _SUBLANE)                 # VMEM blocks are padded to 8 sublanes
    # 3 input streams + 1 output stream, double-buffered -> 8 resident block copies.
    per_lane = 8 * c8 * elem_bytes
    max_tile = max(_LANE, (budget // per_lane) // _LANE * _LANE)
    hw_pad0 = _round_up(HW, _LANE)
    if hw_pad0 <= max_tile:
        tile_hw, n_spatial = hw_pad0, 1
    else:
        tile_hw = max_tile
        n_spatial = -(-hw_pad0 // tile_hw)
    hw_pad = tile_hw * n_spatial

    # Fold batch elements into one grid step until each step moves >= ~1 MiB per stream
    # (otherwise the ~0.35 us/step fixed overhead — not HBM bandwidth — dominates).
    bb = 1
    if n_spatial == 1:
        target = 1 << 20
        while (bb * 2 <= B and B % (bb * 2) == 0
               and (bb * 2) * per_lane * tile_hw <= budget
               and bb * C * tile_hw * elem_bytes < target):
            bb *= 2
    return bb, tile_hw, n_spatial, hw_pad, limit


def _make_kernel(C, bb, use_mxu):
    """Grid = (batch_block, spatial_tile).

    a_ref, m_ref : SMEM (B,) f32        sqrt_alpha_bar[t_b], sqrt(1 - alpha_bar[t_b])
    bt_ref       : SMEM (B*C,) f32      conv bias + time embedding, flattened
    w_ref        : SMEM (C*C,) f32 (VPU path)  |  VMEM (C, C) f32 resident (MXU path)
    x/eps/low    : VMEM (bb, C, TILE_HW) blocks (native input dtype)
    out_ref      : VMEM (bb, C, TILE_HW) block (lane-dense, multiple of 128)
    """

    def kernel(a_ref, m_ref, bt_ref, w_ref, x_ref, eps_ref, low_ref, out_ref):
        bblk = pl.program_id(0)
        for i in range(bb):                       # static unroll over folded batch elems
            b = bblk * bb + i
            a = a_ref[b]                          # extract(sqrt_alpha_bar, t)
            mm = m_ref[b]                         # extract(minus_sqrt_alpha_bar, t)

            x = x_ref[i].astype(jnp.float32)
            e = eps_ref[i].astype(jnp.float32)
            lo = low_ref[i].astype(jnp.float32)

            # compute_noisy_input: x_t = x * sqrt(ab) + low_res + eps * sqrt(1 - ab)
            x_t = x * a + lo + e * mm             # (C, TILE_HW) f32

            if use_mxu:
                # 1x1 conv on the MXU: bf16 inputs, f32 accumulation (one MXU pass
                # instead of emulated f32xf32).
                out = jnp.dot(w_ref[...].astype(jnp.bfloat16),
                              x_t.astype(jnp.bfloat16),
                              preferred_element_type=jnp.float32)
                # bias + time-embedding column built from SMEM scalars (select chain).
                cidx = jax.lax.broadcasted_iota(jnp.int32, (C, 1), 0)
                bt_col = jnp.zeros((C, 1), jnp.float32)
                for c in range(C):
                    bt_col = jnp.where(cidx == c, bt_ref[b * C + c], bt_col)
                out = out + bt_col
            else:
                # Tiny C: MXU would be nearly empty.  1x1 conv as C^2 scalar-scaled row
                # FMAs (pure VPU, weights as SMEM scalars, no XLU sublane broadcasts).
                x_rows = [x_t[c:c + 1, :] for c in range(C)]
                rows = []
                for co in range(C):
                    acc = x_rows[0] * w_ref[co * C]
                    for ci in range(1, C):
                        acc = acc + x_rows[ci] * w_ref[co * C + ci]
                    rows.append(acc + bt_ref[b * C + co])   # + bias/temb scalar
                out = jnp.concatenate(rows, axis=0)          # (C, TILE_HW)

            out_ref[i] = out.astype(out_ref.dtype)

    return kernel


def make_schedules(beta_1=1e-4, beta_2=0.02, T=1000):
    # mirrors DDPMv2.__init__ buffers (only the ones forward() touches)
    betas = jnp.linspace(beta_1, beta_2, T, dtype=jnp.float32)
    alphas = 1.0 - betas
    alpha_bar = jnp.cumprod(alphas)
    return {
        "betas": betas,
        "sqrt_alpha_bar": jnp.sqrt(alpha_bar),
        "minus_sqrt_alpha_bar": jnp.sqrt(1.0 - alpha_bar),
    }


def make_decoder_params(key, C, T):
    kw, kb, kt = jax.random.split(key, 3)
    return {
        "w": jax.random.normal(kw, (C, C), jnp.float32) * 0.1,     # 1x1 conv weight
        "bias": jax.random.normal(kb, (C,), jnp.float32) * 0.1,    # conv bias
        "temb": jax.random.normal(kt, (T, C), jnp.float32) * 0.1,  # time-embedding table
    }


def ddpmv2_forward(params, sched, x, eps, t, low_res, z=None, out_dtype=jnp.float32):
    """x, eps, low_res: (B, C, H, W) float (NCHW); t: (B,) int32.

    out_dtype: f32 by default (matches PyTorch numerics); pass jnp.bfloat16 to halve
    output HBM writeback if the downstream consumer tolerates it.
    """
    B, C, H, W = x.shape
    HW = H * W
    elem_bytes = jnp.dtype(x.dtype).itemsize
    bb, tile_hw, n_spatial, hw_pad, vmem_limit = _choose_tiling(B, C, HW, elem_bytes)

    def as_slab(v):
        v = v.reshape(B, C, HW)                  # contiguous reshape: free
        if hw_pad != HW:                         # only copies when HW isn't tileable as-is
            v = jnp.pad(v, ((0, 0), (0, 0), (0, hw_pad - HW)))
        return v

    x_s, eps_s, low_s = as_slab(x), as_slab(eps), as_slab(low_res)

    # extract(...) == per-batch scalar gathers (glue, plain JAX -> SMEM)
    a = sched["sqrt_alpha_bar"][t].astype(jnp.float32)                     # (B,)
    m = sched["minus_sqrt_alpha_bar"][t].astype(jnp.float32)               # (B,)
    bt = (params["bias"][None, :] + params["temb"][t]).astype(jnp.float32).reshape(B * C)

    use_mxu = C >= _MXU_MIN_C
    if use_mxu:
        w_arg = params["w"].astype(jnp.float32)                            # (C, C), resident
        w_spec = pl.BlockSpec((C, C), lambda bi, si: (0, 0))
    else:
        w_arg = params["w"].astype(jnp.float32).reshape(C * C)             # SMEM scalars
        w_spec = pl.BlockSpec(memory_space=pltpu.MemorySpace.SMEM)

    smem = pl.BlockSpec(memory_space=pltpu.MemorySpace.SMEM)
    slab_spec = pl.BlockSpec((bb, C, tile_hw), lambda bi, si: (bi, 0, si))

    out = pl.pallas_call(
        _make_kernel(C, bb, use_mxu),
        out_shape=jax.ShapeDtypeStruct((B, C, hw_pad), out_dtype),
        grid=(B // bb, n_spatial),
        in_specs=[smem, smem, smem, w_spec, slab_spec, slab_spec, slab_spec],
        out_specs=slab_spec,
        compiler_params=pltpu.CompilerParams(
            # No carried state on either axis -> shard the grid across both v7x cores.
            dimension_semantics=("parallel", "parallel"),
            # Generation-specific scoped-VMEM budget (~80% of physical capacity).
            vmem_limit_bytes=vmem_limit,
        ),
    )(a, m, bt, w_arg, x_s, eps_s, low_s)

    # TODO(synk): the injected PyTorch decoder also conditions on z (VAE latent); this
    # synthetic decoder ignores z, matching a decoder that does not use it.
    return out[:, :, :HW].reshape(B, C, H, W)


def ddpmv2_forward_ref(params, sched, x, eps, t, low_res):
    """Pure-JAX f32 reference of the same forward pass."""
    a = sched["sqrt_alpha_bar"][t].reshape(-1, 1, 1, 1)
    b = sched["minus_sqrt_alpha_bar"][t].reshape(-1, 1, 1, 1)
    x_t = x * a + low_res + eps * b
    out = jnp.einsum("oc,bchw->bohw", params["w"], x_t)
    out = out + (params["bias"][None, :] + params["temb"][t])[:, :, None, None]
    return out


if __name__ == "__main__":
    B, C, H, W = 2, 4, 16, 16
    T = 1000

    key = jax.random.PRNGKey(0)
    kx, ke, kl, kt, kp = jax.random.split(key, 5)
    x = jax.random.normal(kx, (B, C, H, W), jnp.float32)
    eps = jax.random.normal(ke, (B, C, H, W), jnp.float32)
    low_res = jax.random.normal(kl, (B, C, H, W), jnp.float32)
    t = jax.random.randint(kt, (B,), 0, T, dtype=jnp.int32)

    sched = make_schedules(T=T)
    params = make_decoder_params(kp, C, T)

    out = jax.block_until_ready(ddpmv2_forward(params, sched, x, eps, t, low_res))
    ref = ddpmv2_forward_ref(params, sched, x, eps, t, low_res)

    assert out.shape == (B, C, H, W)
    assert jnp.allclose(out, ref, atol=1e-3, rtol=1e-3), "mismatch vs pure-JAX reference"
    print("KERNEL_OK")
</pallas_src>

<mosaic_0001>
module attributes {stable_mosaic.version = 11 : i64} {
  func.func @kernel(%arg0: i32, %arg1: i32, %arg2: memref<2xf32, #tpu.memory_space<smem>>, %arg3: memref<2xf32, #tpu.memory_space<smem>>, %arg4: memref<8xf32, #tpu.memory_space<smem>>, %arg5: memref<16xf32, #tpu.memory_space<smem>>, %arg6: memref<2x4x256xf32, #tpu.memory_space<vmem>>, %arg7: memref<2x4x256xf32, #tpu.memory_space<vmem>>, %arg8: memref<2x4x256xf32, #tpu.memory_space<vmem>>, %arg9: memref<2x4x256xf32, #tpu.memory_space<vmem>>) attributes {dimension_semantics = [#tpu.dimension_semantics<parallel>, #tpu.dimension_semantics<parallel>], iteration_bounds = array<i64: 1, 1>, scalar_prefetch = 0 : i64, scratch_operands = 0 : i64, tpu.core_type = #tpu.core_type<tc>, window_params = [{transform_indices = @transform_0, window_bounds = array<i64: 2>}, {transform_indices = @transform_1, window_bounds = array<i64: 2>}, {transform_indices = @transform_2, window_bounds = array<i64: 8>}, {transform_indices = @transform_3, window_bounds = array<i64: 16>}, {transform_indices = @transform_4, window_bounds = array<i64: 2, 4, 256>}, {transform_indices = @transform_5, window_bounds = array<i64: 2, 4, 256>}, {transform_indices = @transform_6, window_bounds = array<i64: 2, 4, 256>}, {transform_indices = @transform_7, window_bounds = array<i64: 2, 4, 256>}]} {
    %c2_i32 = arith.constant 2 : i32
    %0 = arith.muli %arg0, %c2_i32 : i32
    %c0_i32 = arith.constant 0 : i32
    %1 = arith.addi %0, %c0_i32 : i32
    %2 = arith.index_cast %1 : i32 to index
    %3 = memref.load %arg2[%2] : memref<2xf32, #tpu.memory_space<smem>>
    %4 = arith.index_cast %1 : i32 to index
    %5 = memref.load %arg3[%4] : memref<2xf32, #tpu.memory_space<smem>>
    %c0 = arith.constant 0 : index
    %c0_0 = arith.constant 0 : index
    %c0_1 = arith.constant 0 : index
    %6 = vector.load %arg6[%c0, %c0_0, %c0_1] : memref<2x4x256xf32, #tpu.memory_space<vmem>>, vector<1x4x256xf32>
    %7 = vector.shape_cast %6 : vector<1x4x256xf32> to vector<4x256xf32>
    %c0_2 = arith.constant 0 : index
    %c0_3 = arith.constant 0 : index
    %c0_4 = arith.constant 0 : index
    %8 = vector.load %arg7[%c0_2, %c0_3, %c0_4] : memref<2x4x256xf32, #tpu.memory_space<vmem>>, vector<1x4x256xf32>
    %9 = vector.shape_cast %8 : vector<1x4x256xf32> to vector<4x256xf32>
    %c0_5 = arith.constant 0 : index
    %c0_6 = arith.constant 0 : index
    %c0_7 = arith.constant 0 : index
    %10 = vector.load %arg8[%c0_5, %c0_6, %c0_7] : memref<2x4x256xf32, #tpu.memory_space<vmem>>, vector<1x4x256xf32>
    %11 = vector.shape_cast %10 : vector<1x4x256xf32> to vector<4x256xf32>
    %12 = vector.broadcast %3 : f32 to vector<4x256xf32>
    %13 = arith.mulf %7, %12 : vector<4x256xf32>
    %14 = arith.addf %13, %11 : vector<4x256xf32>
    %15 = vector.broadcast %5 : f32 to vector<4x256xf32>
    %16 = arith.mulf %9, %15 : vector<4x256xf32>
    %17 = arith.addf %14, %16 : vector<4x256xf32>
    %18 = vector.extract_strided_slice %17 {offsets = [0, 0], sizes = [1, 256], strides = [1, 1]} : vector<4x256xf32> to vector<1x256xf32>
    %19 = vector.extract_strided_slice %17 {offsets = [1, 0], sizes = [1, 256], strides = [1, 1]} : vector<4x256xf32> to vector<1x256xf32>
    %20 = vector.extract_strided_slice %17 {offsets = [2, 0], sizes = [1, 256], strides = [1, 1]} : vector<4x256xf32> to vector<1x256xf32>
    %21 = vector.extract_strided_slice %17 {offsets = [3, 0], sizes = [1, 256], strides = [1, 1]} : vector<4x256xf32> to vector<1x256xf32>
    %c0_8 = arith.constant 0 : index
    %22 = memref.load %arg5[%c0_8] : memref<16xf32, #tpu.memory_space<smem>>
    %23 = vector.broadcast %22 : f32 to vector<1x256xf32>
    %24 = arith.mulf %18, %23 : vector<1x256xf32>
    %c1 = arith.constant 1 : index
    %25 = memref.load %arg5[%c1] : memref<16xf32, #tpu.memory_space<smem>>
    %26 = vector.broadcast %25 : f32 to vector<1x256xf32>
    %27 = arith.mulf %19, %26 : vector<1x256xf32>
    %28 = arith.addf %24, %27 : vector<1x256xf32>
    %c2 = arith.constant 2 : index
    %29 = memref.load %arg5[%c2] : memref<16xf32, #tpu.memory_space<smem>>
    %30 = vector.broadcast %29 : f32 to vector<1x256xf32>
    %31 = arith.mulf %20, %30 : vector<1x256xf32>
    %32 = arith.addf %28, %31 : vector<1x256xf32>
    %c3 = arith.constant 3 : index
    %33 = memref.load %arg5[%c3] : memref<16xf32, #tpu.memory_space<smem>>
    %34 = vector.broadcast %33 : f32 to vector<1x256xf32>
    %35 = arith.mulf %21, %34 : vector<1x256xf32>
    %36 = arith.addf %32, %35 : vector<1x256xf32>
    %c4_i32 = arith.constant 4 : i32
    %37 = arith.muli %1, %c4_i32 : i32
    %c0_i32_9 = arith.constant 0 : i32
    %38 = arith.addi %37, %c0_i32_9 : i32
    %39 = arith.index_cast %38 : i32 to index
    %40 = memref.load %arg4[%39] : memref<8xf32, #tpu.memory_space<smem>>
    %41 = vector.broadcast %40 : f32 to vector<1x256xf32>
    %42 = arith.addf %36, %41 : vector<1x256xf32>
    %c4 = arith.constant 4 : index
    %43 = memref.load %arg5[%c4] : memref<16xf32, #tpu.memory_space<smem>>
    %44 = vector.broadcast %43 : f32 to vector<1x256xf32>
    %45 = arith.mulf %18, %44 : vector<1x256xf32>
    %c5 = arith.constant 5 : index
    %46 = memref.load %arg5[%c5] : memref<16xf32, #tpu.memory_space<smem>>
    %47 = vector.broadcast %46 : f32 to vector<1x256xf32>
    %48 = arith.mulf %19, %47 : vector<1x256xf32>
    %49 = arith.addf %45, %48 : vector<1x256xf32>
    %c6 = arith.constant 6 : index
    %50 = memref.load %arg5[%c6] : memref<16xf32, #tpu.memory_space<smem>>
    %51 = vector.broadcast %50 : f32 to vector<1x256xf32>
    %52 = arith.mulf %20, %51 : vector<1x256xf32>
    %53 = arith.addf %49, %52 : vector<1x256xf32>
    %c7 = arith.constant 7 : index
    %54 = memref.load %arg5[%c7] : memref<16xf32, #tpu.memory_space<smem>>
    %55 = vector.broadcast %54 : f32 to vector<1x256xf32>
    %56 = arith.mulf %21, %55 : vector<1x256xf32>
    %57 = arith.addf %53, %56 : vector<1x256xf32>
    %c4_i32_10 = arith.constant 4 : i32
    %58 = arith.muli %1, %c4_i32_10 : i32
    %c1_i32 = arith.constant 1 : i32
    %59 = arith.addi %58, %c1_i32 : i32
    %60 = arith.index_cast %59 : i32 to index
    %61 = memref.load %arg4[%60] : memref<8xf32, #tpu.memory_space<smem>>
    %62 = vector.broadcast %61 : f32 to vector<1x256xf32>
    %63 = arith.addf %57, %62 : vector<1x256xf32>
    %c8 = arith.constant 8 : index
    %64 = memref.load %arg5[%c8] : memref<16xf32, #tpu.memory_space<smem>>
    %65 = vector.broadcast %64 : f32 to vector<1x256xf32>
    %66 = arith.mulf %18, %65 : vector<1x256xf32>
    %c9 = arith.constant 9 : index
    %67 = memref.load %arg5[%c9] : memref<16xf32, #tpu.memory_space<smem>>
    %68 = vector.broadcast %67 : f32 to vector<1x256xf32>
    %69 = arith.mulf %19, %68 : vector<1x256xf32>
    %70 = arith.addf %66, %69 : vector<1x256xf32>
    %c10 = arith.constant 10 : index
    %71 = memref.load %arg5[%c10] : memref<16xf32, #tpu.memory_space<smem>>
    %72 = vector.broadcast %71 : f32 to vector<1x256xf32>
    %73 = arith.mulf %20, %72 : vector<1x256xf32>
    %74 = arith.addf %70, %73 : vector<1x256xf32>
    %c11 = arith.constant 11 : index
    %75 = memref.load %arg5[%c11] : memref<16xf32, #tpu.memory_space<smem>>
    %76 = vector.broadcast %75 : f32 to vector<1x256xf32>
    %77 = arith.mulf %21, %76 : vector<1x256xf32>
    %78 = arith.addf %74, %77 : vector<1x256xf32>
    %c4_i32_11 = arith.constant 4 : i32
    %79 = arith.muli %1, %c4_i32_11 : i32
    %c2_i32_12 = arith.constant 2 : i32
    %80 = arith.addi %79, %c2_i32_12 : i32
    %81 = arith.index_cast %80 : i32 to index
    %82 = memref.load %arg4[%81] : memref<8xf32, #tpu.memory_space<smem>>
    %83 = vector.broadcast %82 : f32 to vector<1x256xf32>
    %84 = arith.addf %78, %83 : vector<1x256xf32>
    %c12 = arith.constant 12 : index
    %85 = memref.load %arg5[%c12] : memref<16xf32, #tpu.memory_space<smem>>
    %86 = vector.broadcast %85 : f32 to vector<1x256xf32>
    %87 = arith.mulf %18, %86 : vector<1x256xf32>
    %c13 = arith.constant 13 : index
    %88 = memref.load %arg5[%c13] : memref<16xf32, #tpu.memory_space<smem>>
    %89 = vector.broadcast %88 : f32 to vector<1x256xf32>
    %90 = arith.mulf %19, %89 : vector<1x256xf32>
    %91 = arith.addf %87, %90 : vector<1x256xf32>
    %c14 = arith.constant 14 : index
    %92 = memref.load %arg5[%c14] : memref<16xf32, #tpu.memory_space<smem>>
    %93 = vector.broadcast %92 : f32 to vector<1x256xf32>
    %94 = arith.mulf %20, %93 : vector<1x256xf32>
    %95 = arith.addf %91, %94 : vector<1x256xf32>
    %c15 = arith.constant 15 : index
    %96 = memref.load %arg5[%c15] : memref<16xf32, #tpu.memory_space<smem>>
    %97 = vector.broadcast %96 : f32 to vector<1x256xf32>
    %98 = arith.mulf %21, %97 : vector<1x256xf32>
    %99 = arith.addf %95, %98 : vector<1x256xf32>
    %c4_i32_13 = arith.constant 4 : i32
    %100 = arith.muli %1, %c4_i32_13 : i32
    %c3_i32 = arith.constant 3 : i32
    %101 = arith.addi %100, %c3_i32 : i32
    %102 = arith.index_cast %101 : i32 to index
    %103 = memref.load %arg4[%102] : memref<8xf32, #tpu.memory_space<smem>>
    %104 = vector.broadcast %103 : f32 to vector<1x256xf32>
    %105 = arith.addf %99, %104 : vector<1x256xf32>
    %106 = tpu.concatenate %42, %63, %84, %105 in 0 : vector<1x256xf32>, vector<1x256xf32>, vector<1x256xf32>, vector<1x256xf32> -> vector<4x256xf32>
    %c0_14 = arith.constant 0 : index
    %c0_15 = arith.constant 0 : index
    %c0_16 = arith.constant 0 : index
    %107 = vector.load %arg9[%c0_14, %c0_15, %c0_16] : memref<2x4x256xf32, #tpu.memory_space<vmem>>, vector<1x4x256xf32>
    %108 = vector.shape_cast %107 : vector<1x4x256xf32> to vector<4x256xf32>
    %109 = vector.shape_cast %106 : vector<4x256xf32> to vector<1x4x256xf32>
    tpu.vector_store %arg9[%c0_14, %c0_15, %c0_16], %109 {strides = array<i32>} : memref<2x4x256xf32, #tpu.memory_space<vmem>>, vector<1x4x256xf32>,
    %c2_i32_17 = arith.constant 2 : i32
    %110 = arith.muli %arg0, %c2_i32_17 : i32
    %c1_i32_18 = arith.constant 1 : i32
    %111 = arith.addi %110, %c1_i32_18 : i32
    %112 = arith.index_cast %111 : i32 to index
    %113 = memref.load %arg2[%112] : memref<2xf32, #tpu.memory_space<smem>>
    %114 = arith.index_cast %111 : i32 to index
    %115 = memref.load %arg3[%114] : memref<2xf32, #tpu.memory_space<smem>>
    %c1_19 = arith.constant 1 : index
    %c0_20 = arith.constant 0 : index
    %c0_21 = arith.constant 0 : index
    %116 = vector.load %arg6[%c1_19, %c0_20, %c0_21] : memref<2x4x256xf32, #tpu.memory_space<vmem>>, vector<1x4x256xf32>
    %117 = vector.shape_cast %116 : vector<1x4x256xf32> to vector<4x256xf32>
    %c1_22 = arith.constant 1 : index
    %c0_23 = arith.constant 0 : index
    %c0_24 = arith.constant 0 : index
    %118 = vector.load %arg7[%c1_22, %c0_23, %c0_24] : memref<2x4x256xf32, #tpu.memory_space<vmem>>, vector<1x4x256xf32>
    %119 = vector.shape_cast %118 : vector<1x4x256xf32> to vector<4x256xf32>
    %c1_25 = arith.constant 1 : index
    %c0_26 = arith.constant 0 : index
    %c0_27 = arith.constant 0 : index
    %120 = vector.load %arg8[%c1_25, %c0_26, %c0_27] : memref<2x4x256xf32, #tpu.memory_space<vmem>>, vector<1x4x256xf32>
    %121 = vector.shape_cast %120 : vector<1x4x256xf32> to vector<4x256xf32>
    %122 = vector.broadcast %113 : f32 to vector<4x256xf32>
    %123 = arith.mulf %117, %122 : vector<4x256xf32>
    %124 = arith.addf %123, %121 : vector<4x256xf32>
    %125 = vector.broadcast %115 : f32 to vector<4x256xf32>
    %126 = arith.mulf %119, %125 : vector<4x256xf32>
    %127 = arith.addf %124, %126 : vector<4x256xf32>
    %128 = vector.extract_strided_slice %127 {offsets = [0, 0], sizes = [1, 256], strides = [1, 1]} : vector<4x256xf32> to vector<1x256xf32>
    %129 = vector.extract_strided_slice %127 {offsets = [1, 0], sizes = [1, 256], strides = [1, 1]} : vector<4x256xf32> to vector<1x256xf32>
    %130 = vector.extract_strided_slice %127 {offsets = [2, 0], sizes = [1, 256], strides = [1, 1]} : vector<4x256xf32> to vector<1x256xf32>
    %131 = vector.extract_strided_slice %127 {offsets = [3, 0], sizes = [1, 256], strides = [1, 1]} : vector<4x256xf32> to vector<1x256xf32>
    %c0_28 = arith.constant 0 : index
    %132 = memref.load %arg5[%c0_28] : memref<16xf32, #tpu.memory_space<smem>>
    %133 = vector.broadcast %132 : f32 to vector<1x256xf32>
    %134 = arith.mulf %128, %133 : vector<1x256xf32>
    %c1_29 = arith.constant 1 : index
    %135 = memref.load %arg5[%c1_29] : memref<16xf32, #tpu.memory_space<smem>>
    %136 = vector.broadcast %135 : f32 to vector<1x256xf32>
    %137 = arith.mulf %129, %136 : vector<1x256xf32>
    %138 = arith.addf %134, %137 : vector<1x256xf32>
    %c2_30 = arith.constant 2 : index
    %139 = memref.load %arg5[%c2_30] : memref<16xf32, #tpu.memory_space<smem>>
    %140 = vector.broadcast %139 : f32 to vector<1x256xf32>
    %141 = arith.mulf %130, %140 : vector<1x256xf32>
    %142 = arith.addf %138, %141 : vector<1x256xf32>
    %c3_31 = arith.constant 3 : index
    %143 = memref.load %arg5[%c3_31] : memref<16xf32, #tpu.memory_space<smem>>
    %144 = vector.broadcast %143 : f32 to vector<1x256xf32>
    %145 = arith.mulf %131, %144 : vector<1x256xf32>
    %146 = arith.addf %142, %145 : vector<1x256xf32>
    %c4_i32_32 = arith.constant 4 : i32
    %147 = arith.muli %111, %c4_i32_32 : i32
    %c0_i32_33 = arith.constant 0 : i32
    %148 = arith.addi %147, %c0_i32_33 : i32
    %149 = arith.index_cast %148 : i32 to index
    %150 = memref.load %arg4[%149] : memref<8xf32, #tpu.memory_space<smem>>
    %151 = vector.broadcast %150 : f32 to vector<1x256xf32>
    %152 = arith.addf %146, %151 : vector<1x256xf32>
    %c4_34 = arith.constant 4 : index
    %153 = memref.load %arg5[%c4_34] : memref<16xf32, #tpu.memory_space<smem>>
    %154 = vector.broadcast %153 : f32 to vector<1x256xf32>
    %155 = arith.mulf %128, %154 : vector<1x256xf32>
    %c5_35 = arith.constant 5 : index
    %156 = memref.load %arg5[%c5_35] : memref<16xf32, #tpu.memory_space<smem>>
    %157 = vector.broadcast %156 : f32 to vector<1x256xf32>
    %158 = arith.mulf %129, %157 : vector<1x256xf32>
    %159 = arith.addf %155, %158 : vector<1x256xf32>
    %c6_36 = arith.constant 6 : index
    %160 = memref.load %arg5[%c6_36] : memref<16xf32, #tpu.memory_space<smem>>
    %161 = vector.broadcast %160 : f32 to vector<1x256xf32>
    %162 = arith.mulf %130, %161 : vector<1x256xf32>
    %163 = arith.addf %159, %162 : vector<1x256xf32>
    %c7_37 = arith.constant 7 : index
    %164 = memref.load %arg5[%c7_37] : memref<16xf32, #tpu.memory_space<smem>>
    %165 = vector.broadcast %164 : f32 to vector<1x256xf32>
    %166 = arith.mulf %131, %165 : vector<1x256xf32>
    %167 = arith.addf %163, %166 : vector<1x256xf32>
    %c4_i32_38 = arith.constant 4 : i32
    %168 = arith.muli %111, %c4_i32_38 : i32
    %c1_i32_39 = arith.constant 1 : i32
    %169 = arith.addi %168, %c1_i32_39 : i32
    %170 = arith.index_cast %169 : i32 to index
    %171 = memref.load %arg4[%170] : memref<8xf32, #tpu.memory_space<smem>>
    %172 = vector.broadcast %171 : f32 to vector<1x256xf32>
    %173 = arith.addf %167, %172 : vector<1x256xf32>
    %c8_40 = arith.constant 8 : index
    %174 = memref.load %arg5[%c8_40] : memref<16xf32, #tpu.memory_space<smem>>
    %175 = vector.broadcast %174 : f32 to vector<1x256xf32>
    %176 = arith.mulf %128, %175 : vector<1x256xf32>
    %c9_41 = arith.constant 9 : index
    %177 = memref.load %arg5[%c9_41] : memref<16xf32, #tpu.memory_space<smem>>
    %178 = vector.broadcast %177 : f32 to vector<1x256xf32>
    %179 = arith.mulf %129, %178 : vector<1x256xf32>
    %180 = arith.addf %176, %179 : vector<1x256xf32>
    %c10_42 = arith.constant 10 : index
    %181 = memref.load %arg5[%c10_42] : memref<16xf32, #tpu.memory_space<smem>>
    %182 = vector.broadcast %181 : f32 to vector<1x256xf32>
    %183 = arith.mulf %130, %182 : vector<1x256xf32>
    %184 = arith.addf %180, %183 : vector<1x256xf32>
    %c11_43 = arith.constant 11 : index
    %185 = memref.load %arg5[%c11_43] : memref<16xf32, #tpu.memory_space<smem>>
    %186 = vector.broadcast %185 : f32 to vector<1x256xf32>
    %187 = arith.mulf %131, %186 : vector<1x256xf32>
    %188 = arith.addf %184, %187 : vector<1x256xf32>
    %c4_i32_44 = arith.constant 4 : i32
    %189 = arith.muli %111, %c4_i32_44 : i32
    %c2_i32_45 = arith.constant 2 : i32
    %190 = arith.addi %189, %c2_i32_45 : i32
    %191 = arith.index_cast %190 : i32 to index
    %192 = memref.load %arg4[%191] : memref<8xf32, #tpu.memory_space<smem>>
    %193 = vector.broadcast %192 : f32 to vector<1x256xf32>
    %194 = arith.addf %188, %193 : vector<1x256xf32>
    %c12_46 = arith.constant 12 : index
    %195 = memref.load %arg5[%c12_46] : memref<16xf32, #tpu.memory_space<smem>>
    %196 = vector.broadcast %195 : f32 to vector<1x256xf32>
    %197 = arith.mulf %128, %196 : vector<1x256xf32>
    %c13_47 = arith.constant 13 : index
    %198 = memref.load %arg5[%c13_47] : memref<16xf32, #tpu.memory_space<smem>>
    %199 = vector.broadcast %198 : f32 to vector<1x256xf32>
    %200 = arith.mulf %129, %199 : vector<1x256xf32>
    %201 = arith.addf %197, %200 : vector<1x256xf32>
    %c14_48 = arith.constant 14 : index
    %202 = memref.load %arg5[%c14_48] : memref<16xf32, #tpu.memory_space<smem>>
    %203 = vector.broadcast %202 : f32 to vector<1x256xf32>
    %204 = arith.mulf %130, %203 : vector<1x256xf32>
    %205 = arith.addf %201, %204 : vector<1x256xf32>
    %c15_49 = arith.constant 15 : index
    %206 = memref.load %arg5[%c15_49] : memref<16xf32, #tpu.memory_space<smem>>
    %207 = vector.broadcast %206 : f32 to vector<1x256xf32>
    %208 = arith.mulf %131, %207 : vector<1x256xf32>
    %209 = arith.addf %205, %208 : vector<1x256xf32>
    %c4_i32_50 = arith.constant 4 : i32
    %210 = arith.muli %111, %c4_i32_50 : i32
    %c3_i32_51 = arith.constant 3 : i32
    %211 = arith.addi %210, %c3_i32_51 : i32
    %212 = arith.index_cast %211 : i32 to index
    %213 = memref.load %arg4[%212] : memref<8xf32, #tpu.memory_space<smem>>
    %214 = vector.broadcast %213 : f32 to vector<1x256xf32>
    %215 = arith.addf %209, %214 : vector<1x256xf32>
    %216 = tpu.concatenate %152, %173, %194, %215 in 0 : vector<1x256xf32>, vector<1x256xf32>, vector<1x256xf32>, vector<1x256xf32> -> vector<4x256xf32>
    %c1_52 = arith.constant 1 : index
    %c0_53 = arith.constant 0 : index
    %c0_54 = arith.constant 0 : index
    %217 = vector.load %arg9[%c1_52, %c0_53, %c0_54] : memref<2x4x256xf32, #tpu.memory_space<vmem>>, vector<1x4x256xf32>
    %218 = vector.shape_cast %217 : vector<1x4x256xf32> to vector<4x256xf32>
    %219 = vector.shape_cast %216 : vector<4x256xf32> to vector<1x4x256xf32>
    tpu.vector_store %arg9[%c1_52, %c0_53, %c0_54], %219 {strides = array<i32>} : memref<2x4x256xf32, #tpu.memory_space<vmem>>, vector<1x4x256xf32>,
    return
  }
  func.func @transform_0(%arg0: i32, %arg1: i32) -> i32 {
    %c0_i32 = arith.constant 0 : i32
    %c0_i32_0 = arith.constant 0 : i32
    return %c0_i32 : i32
  }
  func.func @transform_1(%arg0: i32, %arg1: i32) -> i32 {
    %c0_i32 = arith.constant 0 : i32
    %c0_i32_0 = arith.constant 0 : i32
    return %c0_i32 : i32
  }
  func.func @transform_2(%arg0: i32, %arg1: i32) -> i32 {
    %c0_i32 = arith.constant 0 : i32
    %c0_i32_0 = arith.constant 0 : i32
    return %c0_i32 : i32
  }
  func.func @transform_3(%arg0: i32, %arg1: i32) -> i32 {
    %c0_i32 = arith.constant 0 : i32
    %c0_i32_0 = arith.constant 0 : i32
    return %c0_i32 : i32
  }
  func.func @transform_4(%arg0: i32, %arg1: i32) -> (i32, i32, i32) {
    %c0_i32 = arith.constant 0 : i32
    %c0_i32_0 = arith.constant 0 : i32
    return %arg0, %c0_i32, %arg1 : i32, i32, i32
  }
  func.func @transform_5(%arg0: i32, %arg1: i32) -> (i32, i32, i32) {
    %c0_i32 = arith.constant 0 : i32
    %c0_i32_0 = arith.constant 0 : i32
    return %arg0, %c0_i32, %arg1 : i32, i32, i32
  }
  func.func @transform_6(%arg0: i32, %arg1: i32) -> (i32, i32, i32) {
    %c0_i32 = arith.constant 0 : i32
    %c0_i32_0 = arith.constant 0 : i32
    return %arg0, %c0_i32, %arg1 : i32, i32, i32
  }
  func.func @transform_7(%arg0: i32, %arg1: i32) -> (i32, i32, i32) {
    %c0_i32 = arith.constant 0 : i32
    %c0_i32_0 = arith.constant 0 : i32
    return %arg0, %c0_i32, %arg1 : i32, i32, i32
  }
}

</mosaic_0001>

<llo_original>
// kernel: tpu_custom_call.1
$region0: #{tpu_custom_call.1}
  #allocation0 [shape = 'u32[]', space=smem, size = 0x4, offset = 0x4, fixed_abs, tag = 'smem constant byte address 0x4 - core index']
  #allocation1 [shape = 'u32[72,128]{1,0:T(1,128)}', space=vmem, size = 0x9000, scoped, tag = 'internal scratch']
  %s0 = inlined_call_operand.hbm [shape: f32[2], index: 0, kind: input, shape index: {}]
  %s1 = inlined_call_operand.hbm [shape: f32[2], index: 1, kind: input, shape index: {}]
  %s2 = inlined_call_operand.vmem [shape: f32[8], index: 2, kind: input, shape index: {}]
  %s3 = inlined_call_operand.vmem [shape: f32[16], index: 3, kind: input, shape index: {}]
  %s4 = inlined_call_operand.hbm [shape: f32[2,4,256], index: 4, kind: input, shape index: {}]
  %s5 = inlined_call_operand.hbm [shape: f32[2,4,256], index: 5, kind: input, shape index: {}]
  %s6 = inlined_call_operand.hbm [shape: f32[2,4,256], index: 6, kind: input, shape index: {}]
  %s7 = inlined_call_operand.hbm [shape: f32[2,4,256], index: 7, kind: output, shape index: {}]
  %s8 = sld [smem:[#allocation0]]
  $region66: #{tpu_custom_call.1} parent=0
    _
  %s10 = ssub.s32 1, %s8
  %s11 = scalar_select 0, %s10, %s8
  $region1: #{tpu_custom_call.1} parent=0
    #allocation2 [shape = 'u8[512]{0}', space=smem, size = 0x200, scoped, tag = 'input window, operand 0, single buffered']
    #allocation3 [shape = 's32[1]{0}', space=sflag, size = 0x4, scoped, tag = 'scoped memory for tpu_custom_call.1']
    #allocation4 [shape = 's32[1]{0}', space=sflag, size = 0x4, scoped, tag = 'scoped memory for tpu_custom_call.1']
    #allocation5 [shape = 's32[1]{0}', space=sflag, size = 0x4, scoped, tag = 'scoped memory for tpu_custom_call.1']
    #allocation6 [shape = 's32[1]{0}', space=sflag, size = 0x4, scoped, tag = 'scoped memory for tpu_custom_call.1']
    #allocation7 [shape = 'u8[512]{0}', space=smem, size = 0x200, scoped, tag = 'input window, operand 1, single buffered']
    #allocation8 [shape = 's32[1]{0}', space=sflag, size = 0x4, scoped, tag = 'scoped memory for tpu_custom_call.1']
    #allocation9 [shape = 'u8[512]{0}', space=smem, size = 0x200, scoped, tag = 'input window, operand 2, single buffered']
    #allocation10 [shape = 'u8[512]{0}', space=smem, size = 0x200, scoped, tag = 'input window, operand 3, single buffered']
    #allocation11 [shape = 's32[1]{0}', space=sflag, size = 0x4, scoped, tag = 'scoped memory for tpu_custom_call.1']
    #allocation12 [shape = 'u8[8192]{0}', space=vmem, size = 0x2000, scoped, tag = 'input window, operand 4, single buffered']
    #allocation13 [shape = 'u8[8192]{0}', space=vmem, size = 0x2000, scoped, tag = 'input window, operand 5, single buffered']
    #allocation14 [shape = 's32[1]{0}', space=sflag, size = 0x4, scoped, tag = 'scoped memory for tpu_custom_call.1']
    #allocation15 [shape = 'u8[8192]{0}', space=vmem, size = 0x2000, scoped, tag = 'input window, operand 6, single buffered']
    #allocation16 [shape = 'u8[8192]{0}', space=vmem, size = 0x2000, scoped, tag = 'output window, operand 0, single buffered']
    %12 = vsyncpa [#allocation5], 0
    %13 = vsyncpa [#allocation8], 0
    %14 = vsyncpa [#allocation6], 0
    %15 = vsyncpa [#allocation11], 0
    %16 = vsyncpa [#allocation3], 0
    %17 = vsyncpa [#allocation14], 0
    %18 = vsyncpa [#allocation4], 0
    // Predicated region
    $region2: #{tpu_custom_call.1} parent=1 // pred_check
      _
    $region3: #{tpu_custom_call.1} parent=1 // pred_check_branch
      %20 = sbr.rel (0) target = $region5
    $region4: #{tpu_custom_call.1} parent=1 // pred_region
      %22 = vsyncadd [#allocation5], 0
      %s24 = sshll.u32 %s0, 4
      %s25 = int_to_ptr.hbm [resolvable:$true] %s24
      %27 = dma.hbm_to_smem %s25, 16, [#allocation2], [#allocation5]
    $region5: #{tpu_custom_call.1} parent=1 // pred_fallthru
      _
    // Predicated region
    $region6: #{tpu_custom_call.1} parent=1 // pred_check
      _
    $region7: #{tpu_custom_call.1} parent=1 // pred_check_branch
      %29 = sbr.rel (0) target = $region9
    $region8: #{tpu_custom_call.1} parent=1 // pred_region
      %31 = vsyncadd [#allocation8], 0
      %s33 = sshll.u32 %s1, 4
      %s34 = int_to_ptr.hbm [resolvable:$true] %s33
      %36 = dma.hbm_to_smem %s34, 16, [#allocation7], [#allocation8]
    $region9: #{tpu_custom_call.1} parent=1 // pred_fallthru
      _
    // Predicated region
    $region10: #{tpu_custom_call.1} parent=1 // pred_check
      _
    $region11: #{tpu_custom_call.1} parent=1 // pred_check_branch
      %38 = sbr.rel (0) target = $region13
    $region12: #{tpu_custom_call.1} parent=1 // pred_region
      %40 = vsyncadd [#allocation6], 0
      %s42 = sshll.u32 %s2, 4
      %s43 = int_to_ptr.vmem [resolvable:$true] %s42
      %45 = dma.vmem_to_smem %s43, 16, [#allocation9], [#allocation6]
    $region13: #{tpu_custom_call.1} parent=1 // pred_fallthru
      _
    // Predicated region
    $region14: #{tpu_custom_call.1} parent=1 // pred_check
      _
    $region15: #{tpu_custom_call.1} parent=1 // pred_check_branch
      %47 = sbr.rel (0) target = $region17
    $region16: #{tpu_custom_call.1} parent=1 // pred_region
      %49 = vsyncadd [#allocation11], 0
      %s51 = sshll.u32 %s3, 4
      %s52 = int_to_ptr.vmem [resolvable:$true] %s51
      %54 = dma.vmem_to_smem %s52, 16, [#allocation10], [#allocation11]
    $region17: #{tpu_custom_call.1} parent=1 // pred_fallthru
      _
    // Predicated region
    $region18: #{tpu_custom_call.1} parent=1 // pred_check
      _
    $region19: #{tpu_custom_call.1} parent=1 // pred_check_branch
      %56 = sbr.rel (0) target = $region21
    $region20: #{tpu_custom_call.1} parent=1 // pred_region
      %58 = vsyncadd [#allocation3], 0
      %s59 = sshll.u32 %s4, 4
      %s60 = int_to_ptr.hbm [resolvable:$true] %s59
      %s61 = sshll.u32 [#allocation12], 4
      %s62 = int_to_ptr.vmem [resolvable:$true] %s61
      %67 = dma.hbm_to_vmem [thread:$0]  %s60, 256, %s62, [#allocation3], 128, 128, 8
    $region21: #{tpu_custom_call.1} parent=1 // pred_fallthru
      _
    // Predicated region
    $region22: #{tpu_custom_call.1} parent=1 // pred_check
      _
    $region23: #{tpu_custom_call.1} parent=1 // pred_check_branch
      %69 = sbr.rel (0) target = $region25
    $region24: #{tpu_custom_call.1} parent=1 // pred_region
      %71 = vsyncadd [#allocation14], 0
      %s72 = sshll.u32 %s5, 4
      %s73 = int_to_ptr.hbm [resolvable:$true] %s72
      %s74 = sshll.u32 [#allocation13], 4
      %s75 = int_to_ptr.vmem [resolvable:$true] %s74
      %80 = dma.hbm_to_vmem [thread:$0]  %s73, 256, %s75, [#allocation14], 128, 128, 8
    $region25: #{tpu_custom_call.1} parent=1 // pred_fallthru
      _
    // Predicated region
    $region26: #{tpu_custom_call.1} parent=1 // pred_check
      _
    $region27: #{tpu_custom_call.1} parent=1 // pred_check_branch
      %82 = sbr.rel (0) target = $region29
    $region28: #{tpu_custom_call.1} parent=1 // pred_region
      %84 = vsyncadd [#allocation14], 0
      %s85 = sshll.u32 %s6, 4
      %s86 = int_to_ptr.hbm [resolvable:$true] %s85
      %s87 = sshll.u32 [#allocation15], 4
      %s88 = int_to_ptr.vmem [resolvable:$true] %s87
      %93 = dma.hbm_to_vmem [thread:$0]  %s86, 256, %s88, [#allocation14], 128, 128, 8
    $region29: #{tpu_custom_call.1} parent=1 // pred_fallthru
      _
    // Predicated region
    $region30: #{tpu_custom_call.1} parent=1 // pred_check
      _
    $region31: #{tpu_custom_call.1} parent=1 // pred_check_branch
      %95 = sbr.rel (0) target = $region33
    $region32: #{tpu_custom_call.1} parent=1 // pred_region
      %97 = dma.done [#allocation5], 16
    $region33: #{tpu_custom_call.1} parent=1 // pred_fallthru
      _
    // Predicated region
    $region34: #{tpu_custom_call.1} parent=1 // pred_check
      _
    $region35: #{tpu_custom_call.1} parent=1 // pred_check_branch
      %99 = sbr.rel (0) target = $region37
    $region36: #{tpu_custom_call.1} parent=1 // pred_region
      %101 = dma.done [#allocation8], 16
    $region37: #{tpu_custom_call.1} parent=1 // pred_fallthru
      _
    // Predicated region
    $region38: #{tpu_custom_call.1} parent=1 // pred_check
      _
    $region39: #{tpu_custom_call.1} parent=1 // pred_check_branch
      %103 = sbr.rel (0) target = $region41
    $region40: #{tpu_custom_call.1} parent=1 // pred_region
      %105 = dma.done [#allocation6], 16
    $region41: #{tpu_custom_call.1} parent=1 // pred_fallthru
      _
    // Predicated region
    $region42: #{tpu_custom_call.1} parent=1 // pred_check
      _
    $region43: #{tpu_custom_call.1} parent=1 // pred_check_branch
      %107 = sbr.rel (0) target = $region45
    $region44: #{tpu_custom_call.1} parent=1 // pred_region
      %109 = dma.done [#allocation11], 16
    $region45: #{tpu_custom_call.1} parent=1 // pred_fallthru
      _
    // Predicated region
    $region46: #{tpu_custom_call.1} parent=1 // pred_check
      _
    $region47: #{tpu_custom_call.1} parent=1 // pred_check_branch
      %111 = sbr.rel (0) target = $region49
    $region48: #{tpu_custom_call.1} parent=1 // pred_region
      %113 = dma.done [#allocation3], 256
    $region49: #{tpu_custom_call.1} parent=1 // pred_fallthru
      _
    // Predicated region
    $region50: #{tpu_custom_call.1} parent=1 // pred_check
      _
    $region51: #{tpu_custom_call.1} parent=1 // pred_check_branch
      %115 = sbr.rel (0) target = $region53
    $region52: #{tpu_custom_call.1} parent=1 // pred_region
      %117 = dma.done [#allocation14], 256
    $region53: #{tpu_custom_call.1} parent=1 // pred_fallthru
      _
    // Predicated region
    $region54: #{tpu_custom_call.1} parent=1 // pred_check
      _
    $region55: #{tpu_custom_call.1} parent=1 // pred_check_branch
      %119 = sbr.rel (0) target = $region57
    $region56: #{tpu_custom_call.1} parent=1 // pred_region
      %121 = dma.done [#allocation14], 256
    $region57: #{tpu_custom_call.1} parent=1 // pred_fallthru
      _
    %122 = sfence
    %s123 = smul.u32 0, 2
    %s124 = sld [smem:[#allocation2 + %s123]]
    %s125 = sld [smem:[#allocation7 + %s123]]
    %v126 = vld [vmem:[#allocation12] sm:$0xff]
    %v127 = vld [vmem:[#allocation13] sm:$0xff]
    %v128 = vld [vmem:[#allocation15] sm:$0xff]
    %v129 = vstv %s124
    %v130 = vmul.f32 %v126, %v129
    %v131 = vadd.f32 %v130, %v128
    %v132 = vstv %s125
    %v133 = vmul.f32 %v127, %v132
    %v134 = vadd.f32 %v131, %v133
    %s135 = sld [smem:[#allocation10]]
    %v136 = vstv %s135
    %v137 = vmul.f32 %v134, %v136
    %s138 = sld [smem:[#allocation10 + $0x1]]
    %v139 = vstv %s138
    %v140 = vmul.f32 %v134, %v139
    %v142 = vrot.slane %v140, 5
    %v143 = vrot.slane %v142, 4
    %v145 = vadd.f32 %v137, %v143
    %s146 = sld [smem:[#allocation10 + $0x2]]
    %v147 = vstv %s146
    %v148 = vmul.f32 %v134, %v147
    %v150 = vrot.slane %v148, 6
    %v151 = vrot.slane %v150, 4
    %v153 = vadd.f32 %v145, %v151
    %s154 = sld [smem:[#allocation10 + $0x3]]
    %v155 = vstv %s154
    %v156 = vmul.f32 %v134, %v155
    %v158 = vrot.slane %v156, 7
    %v159 = vrot.slane %v158, 4
    %v161 = vadd.f32 %v153, %v159
    %s162 = smul.u32 0, 8
    %s163 = sld [smem:[#allocation9 + %s162]]
    %v164 = vstv %s163
    %v165 = vadd.f32 %v161, %v164
    %s166 = sld [smem:[#allocation10 + $0x4]]
    %v167 = vstv %s166
    %v168 = vmul.f32 %v134, %v167
    %s169 = sld [smem:[#allocation10 + $0x5]]
    %v170 = vstv %s169
    %v171 = vmul.f32 %v134, %v170
    %v173 = vrot.slane %v171, 5
    %v174 = vrot.slane %v173, 4
    %v176 = vadd.f32 %v168, %v174
    %s177 = sld [smem:[#allocation10 + $0x6]]
    %v178 = vstv %s177
    %v179 = vmul.f32 %v134, %v178
    %v181 = vrot.slane %v179, 6
    %v182 = vrot.slane %v181, 4
    %v184 = vadd.f32 %v176, %v182
    %s185 = sld [smem:[#allocation10 + $0x7]]
    %v186 = vstv %s185
    %v187 = vmul.f32 %v134, %v186
    %v189 = vrot.slane %v187, 7
    %v190 = vrot.slane %v189, 4
    %v192 = vadd.f32 %v184, %v190
    %s193 = sadd.s32 %s162, 1
    %s194 = sld [smem:[#allocation9 + %s193]]
    %v195 = vstv %s194
    %v196 = vadd.f32 %v192, %v195
    %s197 = sld [smem:[#allocation10 + $0x8]]
    %v198 = vstv %s197
    %v199 = vmul.f32 %v134, %v198
    %s200 = sld [smem:[#allocation10 + $0x9]]
    %v201 = vstv %s200
    %v202 = vmul.f32 %v134, %v201
    %v204 = vrot.slane %v202, 5
    %v205 = vrot.slane %v204, 4
    %v207 = vadd.f32 %v199, %v205
    %s208 = sld [smem:[#allocation10 + $0xa]]
    %v209 = vstv %s208
    %v210 = vmul.f32 %v134, %v209
    %v212 = vrot.slane %v210, 6
    %v213 = vrot.slane %v212, 4
    %v215 = vadd.f32 %v207, %v213
    %s216 = sld [smem:[#allocation10 + $0xb]]
    %v217 = vstv %s216
    %v218 = vmul.f32 %v134, %v217
    %v220 = vrot.slane %v218, 7
    %v221 = vrot.slane %v220, 4
    %v223 = vadd.f32 %v215, %v221
    %s224 = sadd.s32 %s162, 2
    %s225 = sld [smem:[#allocation9 + %s224]]
    %v226 = vstv %s225
    %v227 = vadd.f32 %v223, %v226
    %s228 = sld [smem:[#allocation10 + $0xc]]
    %v229 = vstv %s228
    %v230 = vmul.f32 %v134, %v229
    %s231 = sld [smem:[#allocation10 + $0xd]]
    %v232 = vstv %s231
    %v233 = vmul.f32 %v134, %v232
    %v235 = vrot.slane %v233, 5
    %v236 = vrot.slane %v235, 4
    %v238 = vadd.f32 %v230, %v236
    %s239 = sld [smem:[#allocation10 + $0xe]]
    %v240 = vstv %s239
    %v241 = vmul.f32 %v134, %v240
    %v243 = vrot.slane %v241, 6
    %v244 = vrot.slane %v243, 4
    %v246 = vadd.f32 %v238, %v244
    %s247 = sld [smem:[#allocation10 + $0xf]]
    %v248 = vstv %s247
    %v249 = vmul.f32 %v134, %v248
    %v251 = vrot.slane %v249, 7
    %v252 = vrot.slane %v251, 4
    %v254 = vadd.f32 %v246, %v252
    %s255 = sadd.s32 %s162, 3
    %s256 = sld [smem:[#allocation9 + %s255]]
    %v257 = vstv %s256
    %v258 = vadd.f32 %v254, %v257
    %v260 = vperm.slane %v165, 0
    %v261 = vperm.slane %v165, 4
    %v265 = vperm.slane %v196, 0
    %v266 = vperm.slane %v196, 4
    %v270 = vperm.slane %v227, 0
    %v271 = vperm.slane %v227, 4
    %v275 = vperm.slane %v258, 0
    %v276 = vperm.slane %v258, 4
    %vm279 = vcmask 1040384
    %v280 = vsel %vm279, %v260, %v265
    %v281 = vsel %vm279, %v261, %v266
    %vm282 = vcmask 1041408
    %v283 = vsel %vm282, %v280, %v270
    %v284 = vsel %vm282, %v281, %v271
    %vm285 = vcmask 1042432
    %v286 = vsel %vm285, %v283, %v275
    %v287 = vsel %vm285, %v284, %v276
    %v290 = vrot.slane %v287, 4
    %vm291 = vcmask 1043456
    %v292 = vsel %vm291, %v286, %v290
    %294 = vst [vmem:[#allocation16] sm:$0xff] %v292
    %s295 = sadd.s32 %s123, 1
    %s296 = sld [smem:[#allocation2 + %s295]]
    %s297 = sld [smem:[#allocation7 + %s295]]
    %s298 = scalar_lea.vmem [#allocation12], 8
    %v299 = vld [vmem:[%s298] sm:$0xff]
    %s300 = scalar_lea.vmem [#allocation13], 8
    %v301 = vld [vmem:[%s300] sm:$0xff]
    %s302 = scalar_lea.vmem [#allocation15], 8
    %v303 = vld [vmem:[%s302] sm:$0xff]
    %v304 = vstv %s296
    %v305 = vmul.f32 %v299, %v304
    %v306 = vadd.f32 %v305, %v303
    %v307 = vstv %s297
    %v308 = vmul.f32 %v301, %v307
    %v309 = vadd.f32 %v306, %v308
    %s310 = sld [smem:[#allocation10]]
    %v311 = vstv %s310
    %v312 = vmul.f32 %v309, %v311
    %s313 = sld [smem:[#allocation10 + $0x1]]
    %v314 = vstv %s313
    %v315 = vmul.f32 %v309, %v314
    %v317 = vrot.slane %v315, 5
    %v318 = vrot.slane %v317, 4
    %v320 = vadd.f32 %v312, %v318
    %s321 = sld [smem:[#allocation10 + $0x2]]
    %v322 = vstv %s321
    %v323 = vmul.f32 %v309, %v322
    %v325 = vrot.slane %v323, 6
    %v326 = vrot.slane %v325, 4
    %v328 = vadd.f32 %v320, %v326
    %s329 = sld [smem:[#allocation10 + $0x3]]
    %v330 = vstv %s329
    %v331 = vmul.f32 %v309, %v330
    %v333 = vrot.slane %v331, 7
    %v334 = vrot.slane %v333, 4
    %v336 = vadd.f32 %v328, %v334
    %s337 = smul.u32 %s295, 4
    %s338 = sld [smem:[#allocation9 + %s337]]
    %v339 = vstv %s338
    %v340 = vadd.f32 %v336, %v339
    %s341 = sld [smem:[#allocation10 + $0x4]]
    %v342 = vstv %s341
    %v343 = vmul.f32 %v309, %v342
    %s344 = sld [smem:[#allocation10 + $0x5]]
    %v345 = vstv %s344
    %v346 = vmul.f32 %v309, %v345
    %v348 = vrot.slane %v346, 5
    %v349 = vrot.slane %v348, 4
    %v351 = vadd.f32 %v343, %v349
    %s352 = sld [smem:[#allocation10 + $0x6]]
    %v353 = vstv %s352
    %v354 = vmul.f32 %v309, %v353
    %v356 = vrot.slane %v354, 6
    %v357 = vrot.slane %v356, 4
    %v359 = vadd.f32 %v351, %v357
    %s360 = sld [smem:[#allocation10 + $0x7]]
    %v361 = vstv %s360
    %v362 = vmul.f32 %v309, %v361
    %v364 = vrot.slane %v362, 7
    %v365 = vrot.slane %v364, 4
    %v367 = vadd.f32 %v359, %v365
    %s368 = sadd.s32 %s337, 1
    %s369 = sld [smem:[#allocation9 + %s368]]
    %v370 = vstv %s369
    %v371 = vadd.f32 %v367, %v370
    %s372 = sld [smem:[#allocation10 + $0x8]]
    %v373 = vstv %s372
    %v374 = vmul.f32 %v309, %v373
    %s375 = sld [smem:[#allocation10 + $0x9]]
    %v376 = vstv %s375
    %v377 = vmul.f32 %v309, %v376
    %v379 = vrot.slane %v377, 5
    %v380 = vrot.slane %v379, 4
    %v382 = vadd.f32 %v374, %v380
    %s383 = sld [smem:[#allocation10 + $0xa]]
    %v384 = vstv %s383
    %v385 = vmul.f32 %v309, %v384
    %v387 = vrot.slane %v385, 6
    %v388 = vrot.slane %v387, 4
    %v390 = vadd.f32 %v382, %v388
    %s391 = sld [smem:[#allocation10 + $0xb]]
    %v392 = vstv %s391
    %v393 = vmul.f32 %v309, %v392
    %v395 = vrot.slane %v393, 7
    %v396 = vrot.slane %v395, 4
    %v398 = vadd.f32 %v390, %v396
    %s399 = sadd.s32 %s337, 2
    %s400 = sld [smem:[#allocation9 + %s399]]
    %v401 = vstv %s400
    %v402 = vadd.f32 %v398, %v401
    %s403 = sld [smem:[#allocation10 + $0xc]]
    %v404 = vstv %s403
    %v405 = vmul.f32 %v309, %v404
    %s406 = sld [smem:[#allocation10 + $0xd]]
    %v407 = vstv %s406
    %v408 = vmul.f32 %v309, %v407
    %v410 = vrot.slane %v408, 5
    %v411 = vrot.slane %v410, 4
    %v413 = vadd.f32 %v405, %v411
    %s414 = sld [smem:[#allocation10 + $0xe]]
    %v415 = vstv %s414
    %v416 = vmul.f32 %v309, %v415
    %v418 = vrot.slane %v416, 6
    %v419 = vrot.slane %v418, 4
    %v421 = vadd.f32 %v413, %v419
    %s422 = sld [smem:[#allocation10 + $0xf]]
    %v423 = vstv %s422
    %v424 = vmul.f32 %v309, %v423
    %v426 = vrot.slane %v424, 7
    %v427 = vrot.slane %v426, 4
    %v429 = vadd.f32 %v421, %v427
    %s430 = sadd.s32 %s337, 3
    %s431 = sld [smem:[#allocation9 + %s430]]
    %v432 = vstv %s431
    %v433 = vadd.f32 %v429, %v432
    %v435 = vperm.slane %v340, 0
    %v436 = vperm.slane %v340, 4
    %v440 = vperm.slane %v371, 0
    %v441 = vperm.slane %v371, 4
    %v445 = vperm.slane %v402, 0
    %v446 = vperm.slane %v402, 4
    %v450 = vperm.slane %v433, 0
    %v451 = vperm.slane %v433, 4
    %v454 = vsel %vm279, %v435, %v440
    %v455 = vsel %vm279, %v436, %v441
    %v456 = vsel %vm282, %v454, %v445
    %v457 = vsel %vm282, %v455, %v446
    %v458 = vsel %vm285, %v456, %v450
    %v459 = vsel %vm285, %v457, %v451
    %v462 = vrot.slane %v459, 4
    %v463 = vsel %vm291, %v458, %v462
    %s465 = scalar_lea.vmem [#allocation16], 8
    %466 = vst [vmem:[%s465] sm:$0xff] %v463
    // Predicated region
    $region58: #{tpu_custom_call.1} parent=1 // pred_check
      _
    $region59: #{tpu_custom_call.1} parent=1 // pred_check_branch
      %468 = sbr.rel (0) target = $region61
    $region60: #{tpu_custom_call.1} parent=1 // pred_region
      %470 = vsyncadd [#allocation4], 0
      %s471 = sshll.u32 [#allocation16], 4
      %s472 = int_to_ptr.vmem [resolvable:$true] %s471
      %s473 = sshll.u32 %s7, 4
      %s474 = int_to_ptr.hbm [resolvable:$true] %s473
      %479 = dma.vmem_to_hbm [thread:$0]  %s472, 256, %s474, [#allocation4], 128, 128, 8
    $region61: #{tpu_custom_call.1} parent=1 // pred_fallthru
      _
    // Predicated region
    $region62: #{tpu_custom_call.1} parent=1 // pred_check
      _
    $region63: #{tpu_custom_call.1} parent=1 // pred_check_branch
      %481 = sbr.rel (0) target = $region65
    $region64: #{tpu_custom_call.1} parent=1 // pred_region
      %483 = dma.done [#allocation4], 256
    $region65: #{tpu_custom_call.1} parent=1 // pred_fallthru
      _
    %484 = vsyncpa [#allocation3], 1
    %485 = vsyncpa [#allocation14], 1
    %486 = vsyncpa [#allocation4], 1
    %487 = vsyncpa [#allocation5], 1
    %488 = vsyncpa [#allocation8], 1
    %489 = vsyncpa [#allocation6], 1
    %490 = vsyncpa [#allocation11], 1

</llo_original>
